<compile_context>
chip_gen: v5e
topology: v5e:2x2
jax: 0.10.0
libtpu: 0.0.40
codegen_flags: <defaults>
</compile_context>

<pallas_src>
import jax
import jax.numpy as jnp
from jax.experimental import pallas as pl
from jax.experimental.pallas import tpu as pltpu


def _dqn_kernel(x_ref, w1_ref, b1_ref, w2_ref, b2_ref, o_ref):
    """Feature-major 2-layer MLP tile.

    x_ref  : [In, TB]  (batch on the lane axis -> lane-dense loads)
    w1_ref : [H,  In]  (PyTorch-native [out, in] layout)
    b1_ref : [H,  1]
    w2_ref : [O,  H]
    b2_ref : [O,  1]
    o_ref  : [O,  TB]  (lane-dense, unmasked stores)
    """
    # Layer 1 on the MXU with f32 accumulation; bias add + ReLU on the VPU.
    h = jnp.dot(w1_ref[...], x_ref[...], preferred_element_type=jnp.float32)
    h = jnp.maximum(h + b1_ref[...], 0.0)
    # Layer 2.  Cast h to the weight dtype so bf16-stored weights hit the fast
    # MXU path; accumulation stays f32.
    out = jnp.dot(w2_ref[...], h.astype(w2_ref.dtype),
                  preferred_element_type=jnp.float32)
    o_ref[...] = (out + b2_ref[...]).astype(o_ref.dtype)


def _round_up(x, m):
    return -(-x // m) * m


def linear_dqn_forward(x, w1, b1, w2, b2, *, min_kernel_batch=128):
    """forward(x) = relu(x @ w1.T + b1) @ w2.T + b2  (PyTorch Linear layout).

    x : [B, In]; w1 : [H, In]; b1 : [H]; w2 : [O, H]; b2 : [O].  Returns [B, O].
    """
    B, in_size = x.shape
    hidden = w1.shape[0]
    out_size = w2.shape[0]

    # Acting path (B = 1..few): custom-call launch + DMA descriptors dominate;
    # a fused XLA matmul pair is strictly faster on every generation.
    if B < min_kernel_batch:
        return jnp.maximum(x @ w1.T + b1, 0.0) @ w2.T + b2

    # Lane-dense batch: pad only up to a multiple of 128 (lane width).
    b_pad = _round_up(B, 128)
    # Give the "parallel" batch axis 2 steps when it costs zero extra padding,
    # so both v7x TensorCores get work; harmless (~0.35us) on 1-TC chips.
    steps = 2 if (b_pad >= 256 and b_pad % 256 == 0) else 1
    tb = b_pad // steps

    x_t = x.T                                      # [In, B]
    if b_pad != B:
        x_t = jnp.pad(x_t, ((0, 0), (0, b_pad - B)))
    b1_c = b1.reshape(hidden, 1)
    b2_c = b2.reshape(out_size, 1)

    x_item = jnp.dtype(x.dtype).itemsize
    w_item = jnp.dtype(w1.dtype).itemsize
    cost = pl.CostEstimate(
        flops=2 * b_pad * (in_size * hidden + hidden * out_size),
        transcendentals=0,
        bytes_accessed=(in_size * b_pad + out_size * b_pad) * x_item
        + (w1.size + b1.size + w2.size + b2.size) * w_item,
    )

    out_t = pl.pallas_call(
        _dqn_kernel,
        out_shape=jax.ShapeDtypeStruct((out_size, b_pad), x.dtype),
        grid=(steps,),
        in_specs=[
            # x streams batch-tile by batch-tile along the lane axis.
            pl.BlockSpec((in_size, tb), lambda i: (0, i)),
            # Weights / biases: constant block index -> fetched once,
            # VMEM-resident across every grid step.
            pl.BlockSpec((hidden, in_size), lambda i: (0, 0)),
            pl.BlockSpec((hidden, 1), lambda i: (0, 0)),
            pl.BlockSpec((out_size, hidden), lambda i: (0, 0)),
            pl.BlockSpec((out_size, 1), lambda i: (0, 0)),
        ],
        out_specs=pl.BlockSpec((out_size, tb), lambda i: (0, i)),
        compiler_params=pltpu.CompilerParams(
            dimension_semantics=("parallel",)),     # megacore split on v7x
        cost_estimate=cost,
    )(x_t, w1, b1_c, w2, b2_c)

    return out_t.T[:B]                              # back to [B, O]


def init_params(key, input_size, hidden_size, output_size, dtype=jnp.float32):
    """PyTorch-layout init mirroring nn.Linear's uniform(-1/sqrt(fan_in), +)."""
    k1, k2, k3, k4 = jax.random.split(key, 4)
    lim1 = 1.0 / (input_size ** 0.5)
    lim2 = 1.0 / (hidden_size ** 0.5)
    w1 = jax.random.uniform(k1, (hidden_size, input_size), dtype, -lim1, lim1)
    b1 = jax.random.uniform(k2, (hidden_size,), dtype, -lim1, lim1)
    w2 = jax.random.uniform(k3, (output_size, hidden_size), dtype, -lim2, lim2)
    b2 = jax.random.uniform(k4, (output_size,), dtype, -lim2, lim2)
    return w1, b1, w2, b2


def _reference(x, w1, b1, w2, b2):
    return jnp.maximum(x @ w1.T + b1, 0.0) @ w2.T + b2


def _check(out, ref):
    # Tolerance covers MXU pass-mode differences between the Pallas matmuls
    # and XLA's default-precision reference; structural bugs are O(0.1-1).
    assert out.shape == ref.shape
    assert bool(jnp.allclose(out, ref, atol=2e-2, rtol=2e-2)), (
        float(jnp.max(jnp.abs(out - ref))))


if __name__ == "__main__":
    # Snake DQN sizes: 11 state features, hidden=32, 3 actions.
    input_size, hidden_size, output_size = 11, 32, 3

    key = jax.random.PRNGKey(0)
    kx1, kx2, kx3, kx4, kp = jax.random.split(key, 5)
    w1, b1, w2, b2 = init_params(kp, input_size, hidden_size, output_size)

    # Case 1: tiny acting-path batch (B=4) -> fused-XLA fallback path.
    x_small = jax.random.normal(kx1, (4, input_size), jnp.float32)
    out_small = jax.block_until_ready(
        linear_dqn_forward(x_small, w1, b1, w2, b2))
    _check(out_small, _reference(x_small, w1, b1, w2, b2))

    # Case 2: replay-buffer batch B=512 -> kernel, 2 grid steps of 256
    # (parallel axis feeds both TensorCores on v7x).
    x_batch = jax.random.normal(kx2, (512, input_size), jnp.float32)
    out_batch = jax.block_until_ready(
        linear_dqn_forward(x_batch, w1, b1, w2, b2))
    _check(out_batch, _reference(x_batch, w1, b1, w2, b2))

    # Case 3: ragged batch B=300 -> padded to 384 lanes, single grid step.
    x_ragged = jax.random.normal(kx3, (300, input_size), jnp.float32)
    out_ragged = jax.block_until_ready(
        linear_dqn_forward(x_ragged, w1, b1, w2, b2))
    _check(out_ragged, _reference(x_ragged, w1, b1, w2, b2))

    # Case 4: B=256 -> kernel, 2 grid steps of 128 (smallest split case).
    x_mid = jax.random.normal(kx4, (256, input_size), jnp.float32)
    out_mid = jax.block_until_ready(
        linear_dqn_forward(x_mid, w1, b1, w2, b2))
    _check(out_mid, _reference(x_mid, w1, b1, w2, b2))

    print("KERNEL_OK")
</pallas_src>

<mosaic_0001>
module attributes {stable_mosaic.version = 11 : i64} {
  func.func @_dqn_kernel(%arg0: i32, %arg1: memref<11x256xf32, #tpu.memory_space<vmem>>, %arg2: memref<32x11xf32, #tpu.memory_space<vmem>>, %arg3: memref<32x1xf32, #tpu.memory_space<vmem>>, %arg4: memref<3x32xf32, #tpu.memory_space<vmem>>, %arg5: memref<3x1xf32, #tpu.memory_space<vmem>>, %arg6: memref<3x256xf32, #tpu.memory_space<vmem>>) attributes {dimension_semantics = [#tpu.dimension_semantics<parallel>], iteration_bounds = array<i64: 2>, scalar_prefetch = 0 : i64, scratch_operands = 0 : i64, tpu.core_type = #tpu.core_type<tc>, window_params = [{transform_indices = @transform_0, window_bounds = array<i64: 11, 256>}, {pipeline_mode = #tpu.pipeline_mode<synchronous>, transform_indices = @transform_1, window_bounds = array<i64: 32, 11>}, {pipeline_mode = #tpu.pipeline_mode<synchronous>, transform_indices = @transform_2, window_bounds = array<i64: 32, 1>}, {pipeline_mode = #tpu.pipeline_mode<synchronous>, transform_indices = @transform_3, window_bounds = array<i64: 3, 32>}, {pipeline_mode = #tpu.pipeline_mode<synchronous>, transform_indices = @transform_4, window_bounds = array<i64: 3, 1>}, {transform_indices = @transform_5, window_bounds = array<i64: 3, 256>}]} {
    %c0 = arith.constant 0 : index
    %c0_0 = arith.constant 0 : index
    %0 = vector.load %arg2[%c0, %c0_0] : memref<32x11xf32, #tpu.memory_space<vmem>>, vector<32x11xf32>
    %c0_1 = arith.constant 0 : index
    %c0_2 = arith.constant 0 : index
    %1 = vector.load %arg1[%c0_1, %c0_2] : memref<11x256xf32, #tpu.memory_space<vmem>>, vector<11x256xf32>
    %cst = arith.constant dense<0.000000e+00> : vector<32x256xf32>
    %2 = tpu.matmul %0, %1, %cst {dimension_numbers = #tpu.dot_dimension_numbers<[1], [0], [0], [1], [0, 0, 1, 1], [], []>} : vector<32x11xf32>, vector<11x256xf32>, vector<32x256xf32> -> vector<32x256xf32>
    %c0_3 = arith.constant 0 : index
    %c0_4 = arith.constant 0 : index
    %3 = vector.load %arg3[%c0_3, %c0_4] : memref<32x1xf32, #tpu.memory_space<vmem>>, vector<32x1xf32>
    %4 = vector.broadcast %3 : vector<32x1xf32> to vector<32x256xf32>
    %5 = arith.addf %2, %4 : vector<32x256xf32>
    %cst_5 = arith.constant 0.000000e+00 : f32
    %6 = vector.broadcast %cst_5 : f32 to vector<32x256xf32>
    %7 = arith.maximumf %5, %6 : vector<32x256xf32>
    %c0_6 = arith.constant 0 : index
    %c0_7 = arith.constant 0 : index
    %8 = vector.load %arg4[%c0_6, %c0_7] : memref<3x32xf32, #tpu.memory_space<vmem>>, vector<3x32xf32>
    %cst_8 = arith.constant dense<0.000000e+00> : vector<3x256xf32>
    %9 = tpu.matmul %8, %7, %cst_8 {dimension_numbers = #tpu.dot_dimension_numbers<[1], [0], [0], [1], [0, 0, 1, 1], [], []>} : vector<3x32xf32>, vector<32x256xf32>, vector<3x256xf32> -> vector<3x256xf32>
    %c0_9 = arith.constant 0 : index
    %c0_10 = arith.constant 0 : index
    %10 = vector.load %arg5[%c0_9, %c0_10] : memref<3x1xf32, #tpu.memory_space<vmem>>, vector<3x1xf32>
    %11 = vector.broadcast %10 : vector<3x1xf32> to vector<3x256xf32>
    %12 = arith.addf %9, %11 : vector<3x256xf32>
    %c0_11 = arith.constant 0 : index
    %c0_12 = arith.constant 0 : index
    %13 = vector.load %arg6[%c0_11, %c0_12] : memref<3x256xf32, #tpu.memory_space<vmem>>, vector<3x256xf32>
    tpu.vector_store %arg6[%c0_11, %c0_12], %12 {strides = array<i32>} : memref<3x256xf32, #tpu.memory_space<vmem>>, vector<3x256xf32>,
    return
  }
  func.func @transform_0(%arg0: i32) -> (i32, i32) {
    %c0_i32 = arith.constant 0 : i32
    %c0_i32_0 = arith.constant 0 : i32
    return %c0_i32, %arg0 : i32, i32
  }
  func.func @transform_1(%arg0: i32) -> (i32, i32) {
    %c0_i32 = arith.constant 0 : i32
    %c0_i32_0 = arith.constant 0 : i32
    %c0_i32_1 = arith.constant 0 : i32
    return %c0_i32, %c0_i32_0 : i32, i32
  }
  func.func @transform_2(%arg0: i32) -> (i32, i32) {
    %c0_i32 = arith.constant 0 : i32
    %c0_i32_0 = arith.constant 0 : i32
    %c0_i32_1 = arith.constant 0 : i32
    return %c0_i32, %c0_i32_0 : i32, i32
  }
  func.func @transform_3(%arg0: i32) -> (i32, i32) {
    %c0_i32 = arith.constant 0 : i32
    %c0_i32_0 = arith.constant 0 : i32
    %c0_i32_1 = arith.constant 0 : i32
    return %c0_i32, %c0_i32_0 : i32, i32
  }
  func.func @transform_4(%arg0: i32) -> (i32, i32) {
    %c0_i32 = arith.constant 0 : i32
    %c0_i32_0 = arith.constant 0 : i32
    %c0_i32_1 = arith.constant 0 : i32
    return %c0_i32, %c0_i32_0 : i32, i32
  }
  func.func @transform_5(%arg0: i32) -> (i32, i32) {
    %c0_i32 = arith.constant 0 : i32
    %c0_i32_0 = arith.constant 0 : i32
    return %c0_i32, %arg0 : i32, i32
  }
}

</mosaic_0001>

<llo_original>
// kernel: tpu_custom_call.1
$region0: #{tpu_custom_call.1}
  #allocation0 [shape = 'u32[]', space=smem, size = 0x4, offset = 0x4, fixed_abs, tag = 'smem constant byte address 0x4 - core index']
  #allocation1 [shape = 'u32[72,128]{1,0:T(1,128)}', space=vmem, size = 0x9000, scoped, tag = 'internal scratch']
  %s0 = inlined_call_operand.vmem [shape: f32[11,512], index: 0, kind: input, shape index: {}]
  %s1 = inlined_call_operand.vmem [shape: f32[32,11], index: 1, kind: input, shape index: {}]
  %s2 = inlined_call_operand.vmem [shape: f32[32,1], index: 2, kind: input, shape index: {}]
  %s3 = inlined_call_operand.vmem [shape: f32[3,32], index: 3, kind: input, shape index: {}]
  %s4 = inlined_call_operand.vmem [shape: f32[3,1], index: 4, kind: input, shape index: {}]
  %s5 = inlined_call_operand.hbm [shape: f32[3,512], index: 5, kind: output, shape index: {}]
  %s6 = sld [smem:[#allocation0]]
  $region76: #{tpu_custom_call.1} parent=0
    _
  %s8 = ssub.s32 1, %s6
  %s9 = scalar_select 0, %s8, %s6
  $region1: #{tpu_custom_call.1} parent=0
    #allocation2 [shape = 'u8[32768]{0}', space=vmem, size = 0x8000, scoped, tag = 'input window, operand 0']
    #allocation3 [shape = 'u8[8192]{0}', space=vmem, size = 0x2000, scoped, tag = 'output window, operand 0']
    #allocation4 [shape = 's32[2]{0}', space=sflag, size = 0x8, scoped, tag = 'scoped memory for tpu_custom_call.1']
    %10 = vsyncpa [#allocation4], 0
    %s11 = scalar_lea.sflag [#allocation4], 1
    %12 = vsyncpa %s11, 0
    loop: start=0, step=1, limit=4
    $region2: #{tpu_custom_call.1} parent=1 // loop_pre_header
      _
    $region3: #{tpu_custom_call.1} parent=1 // loop_header
      %s14 = sphi 0, %s18
      %p15 = scmp.ge.s32.totalorder %s14, 4
      %s24 = sphi 0, %s26
      %s27 = sphi 0, %s24
      %s28 = sphi 0, %s27
      %s44 = sphi 0, %s28
      %s48 = sphi 0, %s48
      %s50 = sphi 0, %s48
      %s51 = sphi 0, %s50
      %s65 = sphi 0, %s51
      %s69 = sphi 0, %s69
      %s71 = sphi 0, %s69
      %s72 = sphi 0, %s71
      %s86 = sphi 0, %s72
      %s90 = sphi 0, %s90
      %s92 = sphi 0, %s90
      %s93 = sphi 0, %s92
      %s107 = sphi 0, %s93
      %s111 = sphi 0, %s111
      %s113 = sphi 0, %s111
      %s114 = sphi 0, %s113
      %s128 = sphi 0, %s114
      %s134 = sphi 0, %s136
      %s137 = sphi 0, %s134
      %s138 = sphi 0, %s137
      %s154 = sphi 0, %s138
    $region4: #{tpu_custom_call.1} parent=1 // loop_header_branch
      %17 = sbr.rel (%p15) target = $region8
    $region5: #{tpu_custom_call.1} parent=1 // loop_body
      %s19 = ssub.s32 %s14, 1
      %s20 = ssub.s32 %s14, 2
      %s21 = sadd.s32 %s14, 1
      %s22 = ssub.s32 %s14, %s21
      %p23 = scmp.eq.s32.totalorder %s22, 0
      %s25 = sadd.s32 %s24, 1
      %s26 = scalar_select %p23, %s24, %s25
      %p29 = pneg %p23
      %p30 = scmp.eq.s32.totalorder %s14, 1
      %p31 = por %p29, %p30
      %p32 = scmp.ne.s32.totalorder %s24, %s27
      %p33 = scmp.eq.s32.totalorder %s14, 0
      %p34 = por %p32, %p33
      %p35 = scmp.ne.s32.totalorder %s24, %s27
      %p36 = scmp.eq.s32.totalorder %s19, 1
      %p37 = por %p35, %p36
      %p38 = scmp.ne.s32.totalorder %s27, %s28
      %p39 = scmp.eq.s32.totalorder %s19, 0
      %p40 = por %p38, %p39
      %p41 = scmp.ne.s32.totalorder %s27, %s28
      %p42 = scmp.eq.s32.totalorder %s20, 1
      %p43 = por %p41, %p42
      %p45 = scmp.ne.s32.totalorder %s28, %s44
      %p46 = scmp.eq.s32.totalorder %s20, 0
      %p47 = por %p45, %p46
      %s49 = sadd.s32 %s48, 1
      %p52 = scmp.eq.s32.totalorder %s14, 1
      %p53 = scmp.ne.s32.totalorder %s48, %s50
      %p54 = scmp.eq.s32.totalorder %s14, 0
      %p55 = por %p53, %p54
      %p56 = scmp.ne.s32.totalorder %s48, %s50
      %p57 = scmp.eq.s32.totalorder %s19, 1
      %p58 = por %p56, %p57
      %p59 = scmp.ne.s32.totalorder %s50, %s51
      %p60 = scmp.eq.s32.totalorder %s19, 0
      %p61 = por %p59, %p60
      %p62 = scmp.ne.s32.totalorder %s50, %s51
      %p63 = scmp.eq.s32.totalorder %s20, 1
      %p64 = por %p62, %p63
      %p66 = scmp.ne.s32.totalorder %s51, %s65
      %p67 = scmp.eq.s32.totalorder %s20, 0
      %p68 = por %p66, %p67
      %s70 = sadd.s32 %s69, 1
      %p73 = scmp.eq.s32.totalorder %s14, 1
      %p74 = scmp.ne.s32.totalorder %s69, %s71
      %p75 = scmp.eq.s32.totalorder %s14, 0
      %p76 = por %p74, %p75
      %p77 = scmp.ne.s32.totalorder %s69, %s71
      %p78 = scmp.eq.s32.totalorder %s19, 1
      %p79 = por %p77, %p78
      %p80 = scmp.ne.s32.totalorder %s71, %s72
      %p81 = scmp.eq.s32.totalorder %s19, 0
      %p82 = por %p80, %p81
      %p83 = scmp.ne.s32.totalorder %s71, %s72
      %p84 = scmp.eq.s32.totalorder %s20, 1
      %p85 = por %p83, %p84
      %p87 = scmp.ne.s32.totalorder %s72, %s86
      %p88 = scmp.eq.s32.totalorder %s20, 0
      %p89 = por %p87, %p88
      %s91 = sadd.s32 %s90, 1
      %p94 = scmp.eq.s32.totalorder %s14, 1
      %p95 = scmp.ne.s32.totalorder %s90, %s92
      %p96 = scmp.eq.s32.totalorder %s14, 0
      %p97 = por %p95, %p96
      %p98 = scmp.ne.s32.totalorder %s90, %s92
      %p99 = scmp.eq.s32.totalorder %s19, 1
      %p100 = por %p98, %p99
      %p101 = scmp.ne.s32.totalorder %s92, %s93
      %p102 = scmp.eq.s32.totalorder %s19, 0
      %p103 = por %p101, %p102
      %p104 = scmp.ne.s32.totalorder %s92, %s93
      %p105 = scmp.eq.s32.totalorder %s20, 1
      %p106 = por %p104, %p105
      %p108 = scmp.ne.s32.totalorder %s93, %s107
      %p109 = scmp.eq.s32.totalorder %s20, 0
      %p110 = por %p108, %p109
      %s112 = sadd.s32 %s111, 1
      %p115 = scmp.eq.s32.totalorder %s14, 1
      %p116 = scmp.ne.s32.totalorder %s111, %s113
      %p117 = scmp.eq.s32.totalorder %s14, 0
      %p118 = por %p116, %p117
      %p119 = scmp.ne.s32.totalorder %s111, %s113
      %p120 = scmp.eq.s32.totalorder %s19, 1
      %p121 = por %p119, %p120
      %p122 = scmp.ne.s32.totalorder %s113, %s114
      %p123 = scmp.eq.s32.totalorder %s19, 0
      %p124 = por %p122, %p123
      %p125 = scmp.ne.s32.totalorder %s113, %s114
      %p126 = scmp.eq.s32.totalorder %s20, 1
      %p127 = por %p125, %p126
      %p129 = scmp.ne.s32.totalorder %s114, %s128
      %p130 = scmp.eq.s32.totalorder %s20, 0
      %p131 = por %p129, %p130
      %s132 = ssub.s32 %s14, %s21
      %p133 = scmp.eq.s32.totalorder %s132, 0
      %s135 = sadd.s32 %s134, 1
      %s136 = scalar_select %p133, %s134, %s135
      %p139 = pneg %p133
      %p140 = scmp.eq.s32.totalorder %s14, 1
      %p141 = por %p139, %p140
      %p142 = scmp.ne.s32.totalorder %s134, %s137
      %p143 = scmp.eq.s32.totalorder %s14, 0
      %p144 = por %p142, %p143
      %p145 = scmp.ne.s32.totalorder %s134, %s137
      %p146 = scmp.eq.s32.totalorder %s19, 1
      %p147 = por %p145, %p146
      %p148 = scmp.ne.s32.totalorder %s137, %s138
      %p149 = scmp.eq.s32.totalorder %s19, 0
      %p150 = por %p148, %p149
      %p151 = scmp.ne.s32.totalorder %s137, %s138
      %p152 = scmp.eq.s32.totalorder %s20, 1
      %p153 = por %p151, %p152
      %p155 = scmp.ne.s32.totalorder %s138, %s154
      %p156 = scmp.eq.s32.totalorder %s20, 0
      %p157 = por %p155, %p156
      %p158 = scmp.le.s32.totalorder 1, %s14
      %p159 = scmp.lt.s32.totalorder %s14, 3
      %p160 = pnand %p158, %p159
      %p161 = pneg %p160
      // Predicated region
      $region9: #{tpu_custom_call.1} parent=5 // pred_check
        _
      $region10: #{tpu_custom_call.1} parent=5 // pred_check_branch
        %163 = sbr.rel (%p160) target = $region12
      $region11: #{tpu_custom_call.1} parent=5 // pred_region
        %s164 = ssub.s32 %s14, 1
        // Predicated region
        $region13: #{tpu_custom_call.1} parent=11 // pred_check
          %p165 = pneg %p61
        $region14: #{tpu_custom_call.1} parent=11 // pred_check_branch
          %167 = sbr.rel (%p165) target = $region16
        $region15: #{tpu_custom_call.1} parent=11 // pred_region
          _
        $region16: #{tpu_custom_call.1} parent=11 // pred_fallthru
          _
        // Predicated region
        $region17: #{tpu_custom_call.1} parent=11 // pred_check
          %p168 = pneg %p82
        $region18: #{tpu_custom_call.1} parent=11 // pred_check_branch
          %170 = sbr.rel (%p168) target = $region20
        $region19: #{tpu_custom_call.1} parent=11 // pred_region
          _
        $region20: #{tpu_custom_call.1} parent=11 // pred_fallthru
          _
        // Predicated region
        $region21: #{tpu_custom_call.1} parent=11 // pred_check
          %p171 = pneg %p103
        $region22: #{tpu_custom_call.1} parent=11 // pred_check_branch
          %173 = sbr.rel (%p171) target = $region24
        $region23: #{tpu_custom_call.1} parent=11 // pred_region
          _
        $region24: #{tpu_custom_call.1} parent=11 // pred_fallthru
          _
        // Predicated region
        $region25: #{tpu_custom_call.1} parent=11 // pred_check
          %p174 = pneg %p124
        $region26: #{tpu_custom_call.1} parent=11 // pred_check_branch
          %176 = sbr.rel (%p174) target = $region28
        $region27: #{tpu_custom_call.1} parent=11 // pred_region
          _
        $region28: #{tpu_custom_call.1} parent=11 // pred_fallthru
          _
      $region12: #{tpu_custom_call.1} parent=5 // pred_fallthru
        _
      %p177 = scmp.lt.s32.totalorder %s14, 2
      // Predicated region
      $region29: #{tpu_custom_call.1} parent=5 // pred_check
        %p178 = pneg %p177
      $region30: #{tpu_custom_call.1} parent=5 // pred_check_branch
        %180 = sbr.rel (%p178) target = $region32
      $region31: #{tpu_custom_call.1} parent=5 // pred_region
        // Predicated region
        $region33: #{tpu_custom_call.1} parent=31 // pred_check
          %p181 = pneg %p34
        $region34: #{tpu_custom_call.1} parent=31 // pred_check_branch
          %183 = sbr.rel (%p181) target = $region36
        $region35: #{tpu_custom_call.1} parent=31 // pred_region
          %s184 = sand.u32 %s24, 1
          %s185 = sand.u32 %s24, 1
          %s186 = smul.addr %s185, 32
          %s187 = scalar_lea.vmem [#allocation2], %s186
          %s188 = smul.u32 2, %s14
          %s189 = smul.addr %s188, 8
          %s190 = scalar_lea.vmem %s0, %s189
          // Predicated region
          $region37: #{tpu_custom_call.1} parent=35 // pred_check
            _
          $region38: #{tpu_custom_call.1} parent=35 // pred_check_branch
            %192 = sbr.rel (0) target = $region40
          $region39: #{tpu_custom_call.1} parent=35 // pred_region
            // Predicated region
            $region41: #{tpu_custom_call.1} parent=39 // pred_check
              _
            $region42: #{tpu_custom_call.1} parent=39 // pred_check_branch
              %194 = sbr.rel (0) target = $region44
            $region43: #{tpu_custom_call.1} parent=39 // pred_region
              loop: start=0, step=1, limit=1
              $region45: #{tpu_custom_call.1} parent=43 // loop_pre_header
                _
              $region46: #{tpu_custom_call.1} parent=43 // loop_header
                %s196 = sphi 0, %s200
                %p197 = scmp.ge.s32.totalorder %s196, 1
                %s201 = sphi %s190, %s190
                %s202 = sphi %s187, %s187
              $region47: #{tpu_custom_call.1} parent=43 // loop_header_branch
                %199 = sbr.rel (%p197) target = $region51
              $region48: #{tpu_custom_call.1} parent=43 // loop_body
                %v203 = vld [vmem:[%s201] sm:$0xff]
                %204 = vst [vmem:[%s202] sm:$0xff] %v203
                %v205 = vld [vmem:[%s201 + $0x8] sm:$0xff]
                %206 = vst [vmem:[%s202 + $0x8] sm:$0xff] %v205
                %v207 = vld [vmem:[%s201 + $0x20] sm:$0xff]
                %208 = vst [vmem:[%s202 + $0x10] sm:$0xff] %v207
                %v209 = vld [vmem:[%s201 + $0x28] sm:$0xff]
                %210 = vst [vmem:[%s202 + $0x18] sm:$0xff] %v209
              $region49: #{tpu_custom_call.1} parent=43 // loop_footer
                %s200 = sadd.s32 1, %s196
              $region50: #{tpu_custom_call.1} parent=43 // loop_footer_branch
                %195 = sbr.rel target = $region46
              $region51: #{tpu_custom_call.1} parent=43 // loop_exit
                _
            $region44: #{tpu_custom_call.1} parent=39 // pred_fallthru
              _
            // Predicated region
            $region52: #{tpu_custom_call.1} parent=39 // pred_check
              _
            $region53: #{tpu_custom_call.1} parent=39 // pred_check_branch
              %212 = sbr.rel target = $region55
            $region54: #{tpu_custom_call.1} parent=39 // pred_region
              _
            $region55: #{tpu_custom_call.1} parent=39 // pred_fallthru
              _
          $region40: #{tpu_custom_call.1} parent=35 // pred_fallthru
            _
          %213 = vnop
        $region36: #{tpu_custom_call.1} parent=31 // pred_fallthru
          _
      $region32: #{tpu_custom_call.1} parent=5 // pred_fallthru
        _
      %p214 = scmp.le.s32.totalorder 1, %s14
      %p215 = scmp.lt.s32.totalorder %s14, 3
      %p216 = pnand %p214, %p215
      %p217 = pneg %p216
      // Predicated region
      $region56: #{tpu_custom_call.1} parent=5 // pred_check
        _
      $region57: #{tpu_custom_call.1} parent=5 // pred_check_branch
        %219 = sbr.rel (%p216) target = $region59
      $region58: #{tpu_custom_call.1} parent=5 // pred_region
        %s220 = ssub.s32 %s14, 1
        %s221 = sand.u32 %s27, 1
        %s222 = sand.u32 %s27, 1
        %s223 = smul.addr %s222, 32
        %s224 = scalar_lea.vmem [#allocation2], %s223
        // Predicated region
        $region60: #{tpu_custom_call.1} parent=58 // pred_check
          %p225 = pneg %p40
        $region61: #{tpu_custom_call.1} parent=58 // pred_check_branch
          %227 = sbr.rel (%p225) target = $region63
        $region62: #{tpu_custom_call.1} parent=58 // pred_region
          _
        $region63: #{tpu_custom_call.1} parent=58 // pred_fallthru
          _
        %s228 = sand.u32 %s27, 1
        %s229 = sand.u32 %s27, 1
        %s230 = smul.addr %s229, 32
        %s231 = scalar_lea.vmem [#allocation2], %s230
        %p232 = pneg %p40
        %p233 = pneg %p37
        %p234 = pneg %p61
        %p235 = pneg %p58
        %p236 = pneg %p82
        %p237 = pneg %p79
        %p238 = pneg %p103
        %p239 = pneg %p100
        %p240 = pneg %p124
        %p241 = pneg %p121
        %p242 = pneg %p150
        %p243 = pneg %p147
        %s244 = sand.u32 %s137, 1
        %s245 = scalar_lea.sflag [#allocation4], %s244
        %s246 = sand.u32 %s137, 1
        %s247 = smul.addr %s246, 8
        %s248 = scalar_lea.vmem [#allocation3], %s247
        %s249 = smul.u32 2, %s19
        %s250 = smul.u32 2, %s19
        %v251 = vld [vmem:[%s1] sm:$0xff]
        %v252 = vld [vmem:[%s1 + $0x8] sm:$0xff]
        %v253 = vld [vmem:[%s1 + $0x10] sm:$0xff]
        %v254 = vld [vmem:[%s1 + $0x18] sm:$0xff]
        %v255 = vld [vmem:[%s224] sm:$0xff]
        %v256 = vld [vmem:[%s224 + $0x8] sm:$0xff]
        %v257 = vld [vmem:[%s224 + $0x10] sm:$0x7]
        %v258 = vld [vmem:[%s224 + $0x18] sm:$0x7]
        %v259 = vld [vmem:[%s2] sm:$0xff]
        %v260 = vld [vmem:[%s2 + $0x8] sm:$0xff]
        %v261 = vld [vmem:[%s2 + $0x10] sm:$0xff]
        %v262 = vld [vmem:[%s2 + $0x18] sm:$0xff]
        %264 = vset.pattern.permute.xlu0 0
        %265 = vperm.xlu0 %264, %v259
        %v266 = vpop.permute.xlu0 %265
        %269 = vset.pattern.permute.xlu0 0
        %270 = vperm.xlu0 %269, %v260
        %v271 = vpop.permute.xlu0 %270
        %274 = vset.pattern.permute.xlu0 0
        %275 = vperm.xlu0 %274, %v261
        %v276 = vpop.permute.xlu0 %275
        %279 = vset.pattern.permute.xlu0 0
        %280 = vperm.xlu0 %279, %v262
        %v281 = vpop.permute.xlu0 %280
        %vm283 = vcmask 89088
        %v285 = vsel %vm283, %v251, 0
        %v288 = vsel %vm283, %v252, 0
        %v291 = vsel %vm283, %v253, 0
        %v294 = vsel %vm283, %v254, 0
        %vm296 = vcmask 1042432
        %v298 = vsel %vm296, %v257, 0
        %v301 = vsel %vm296, %v258, 0
        %303 = vmatpush.msra.mxu0 0.0
        %304 = vmatpush.msra.mxu0 0.0
        %305 = vmatpush.msra.mxu0 0.0
        %306 = vmatpush.msra.mxu0 0.0
        %307 = vmatpush.msra.mxu0 0.0
        %308 = vmatpush.msra.mxu0 0.0
        %309 = vmatpush.msra.mxu0 0.0
        %310 = vmatpush.msra.mxu0 0.0
        %311 = vmatpush.msra.mxu0 0.0
        %312 = vmatpush.msra.mxu0 0.0
        %313 = vmatpush.msra.mxu0 0.0
        %314 = vmatpush.msra.mxu0 0.0
        %315 = vmatpush.msra.mxu0 0.0
        %316 = vmatpush.msra.mxu0 0.0
        %317 = vmatpush.msra.mxu0 %v298
        %318 = vmatpush.msra.mxu0 %v255
        %319 = vmatmul.f32.gmra.mxu0 %v285
        %v320 = vpop.f32.mrf.mxu0
        %v321 = vadd.f32 %v266, %v320
        %322 = vmatmul.f32.gmra.mxu0 %v288
        %v323 = vpop.f32.mrf.mxu0
        %v324 = vadd.f32 %v271, %v323
        %325 = vmatmul.f32.gmra.mxu0 %v291
        %v326 = vpop.f32.mrf.mxu0
        %v327 = vadd.f32 %v276, %v326
        %328 = vmatmul.f32.gmra.mxu0 %v294
        %v329 = vpop.f32.mrf.mxu0
        %v330 = vadd.f32 %v281, %v329
        %331 = vdwg.mxu0
        %332 = vmatpush.msra.mxu0 0.0
        %333 = vmatpush.msra.mxu0 0.0
        %334 = vmatpush.msra.mxu0 0.0
        %335 = vmatpush.msra.mxu0 0.0
        %336 = vmatpush.msra.mxu0 0.0
        %337 = vmatpush.msra.mxu0 0.0
        %338 = vmatpush.msra.mxu0 0.0
        %339 = vmatpush.msra.mxu0 0.0
        %340 = vmatpush.msra.mxu0 0.0
        %341 = vmatpush.msra.mxu0 0.0
        %342 = vmatpush.msra.mxu0 0.0
        %343 = vmatpush.msra.mxu0 0.0
        %344 = vmatpush.msra.mxu0 0.0
        %345 = vmatpush.msra.mxu0 0.0
        %346 = vmatpush.msra.mxu0 %v301
        %347 = vmatpush.msra.mxu0 %v256
        %348 = vmatmul.f32.gmra.mxu0 %v285
        %v349 = vpop.f32.mrf.mxu0
        %v350 = vadd.f32 %v266, %v349
        %351 = vmatmul.f32.gmra.mxu0 %v288
        %v352 = vpop.f32.mrf.mxu0
        %v353 = vadd.f32 %v271, %v352
        %354 = vmatmul.f32.gmra.mxu0 %v291
        %v355 = vpop.f32.mrf.mxu0
        %v356 = vadd.f32 %v276, %v355
        %357 = vmatmul.f32.gmra.mxu0 %v294
        %v358 = vpop.f32.mrf.mxu0
        %v359 = vadd.f32 %v281, %v358
        %360 = vdwg.mxu0
        %v361 = vmax.f32 %v321, 0.0
        %v362 = vmax.f32 %v350, 0.0
        %v363 = vmax.f32 %v324, 0.0
        %v364 = vmax.f32 %v353, 0.0
        %v365 = vmax.f32 %v327, 0.0
        %v366 = vmax.f32 %v356, 0.0
        %v367 = vmax.f32 %v330, 0.0
        %v368 = vmax.f32 %v359, 0.0
        %v369 = vld [vmem:[%s3] sm:$0x7]
        %v370 = vld [vmem:[%s4] sm:$0x7]
        %372 = vset.pattern.permute.xlu0 0
        %373 = vperm.xlu0 %372, %v370
        %v374 = vpop.permute.xlu0 %373
        %vm376 = vcmask 261120
        %v378 = vsel %vm376, %v369, 0
        %380 = vmatpush.msra.mxu0 0.0
        %381 = vmatpush.msra.mxu0 0.0
        %382 = vmatpush.msra.mxu0 0.0
        %383 = vmatpush.msra.mxu0 0.0
        %384 = vmatpush.msra.mxu0 0.0
        %385 = vmatpush.msra.mxu0 0.0
        %386 = vmatpush.msra.mxu0 0.0
        %387 = vmatpush.msra.mxu0 0.0
        %388 = vmatpush.msra.mxu0 0.0
        %389 = vmatpush.msra.mxu0 0.0
        %390 = vmatpush.msra.mxu0 0.0
        %391 = vmatpush.msra.mxu0 0.0
        %392 = vmatpush.msra.mxu0 %v367
        %393 = vmatpush.msra.mxu0 %v365
        %394 = vmatpush.msra.mxu0 %v363
        %395 = vmatpush.msra.mxu0 %v361
        %396 = vmatmul.f32.gmra.mxu0 %v378
        %v397 = vpop.f32.mrf.mxu0
        %v398 = vadd.f32 %v374, %v397
        %399 = vdwg.mxu0
        %400 = vmatpush.msra.mxu0 0.0
        %401 = vmatpush.msra.mxu0 0.0
        %402 = vmatpush.msra.mxu0 0.0
        %403 = vmatpush.msra.mxu0 0.0
        %404 = vmatpush.msra.mxu0 0.0
        %405 = vmatpush.msra.mxu0 0.0
        %406 = vmatpush.msra.mxu0 0.0
        %407 = vmatpush.msra.mxu0 0.0
        %408 = vmatpush.msra.mxu0 0.0
        %409 = vmatpush.msra.mxu0 0.0
        %410 = vmatpush.msra.mxu0 0.0
        %411 = vmatpush.msra.mxu0 0.0
        %412 = vmatpush.msra.mxu0 %v368
        %413 = vmatpush.msra.mxu0 %v366
        %414 = vmatpush.msra.mxu0 %v364
        %415 = vmatpush.msra.mxu0 %v362
        %416 = vmatmul.f32.gmra.mxu0 %v378
        %v417 = vpop.f32.mrf.mxu0
        %v418 = vadd.f32 %v374, %v417
        %419 = vdwg.mxu0
        %v422 = vrot.slane %v418, 4
        %vm423 = vcmask 1043456
        %v424 = vsel %vm423, %v398, %v422
        %426 = vst [vmem:[%s248] sm:$0x77] %v424
        %s427 = sand.u32 %s137, 1
        %s428 = scalar_lea.sflag [#allocation4], %s427
        %s429 = sand.u32 %s137, 1
        %s430 = smul.addr %s429, 8
        %s431 = scalar_lea.vmem [#allocation3], %s430
        // Predicated region
        $region64: #{tpu_custom_call.1} parent=58 // pred_check
          %p432 = pneg %p147
        $region65: #{tpu_custom_call.1} parent=58 // pred_check_branch
          %434 = sbr.rel (%p432) target = $region67
        $region66: #{tpu_custom_call.1} parent=58 // pred_region
          %s435 = smul.u32 2, %s19
          %437 = vsyncadd %s428, 0
          %s438 = smul.addr %s435, 4
          %s439 = scalar_lea.hbm %s5, %s438
          %s441 = sshll.u32 %s431, 4
          %s442 = int_to_ptr.vmem [resolvable:$true] %s441
          %s443 = sshll.u32 %s439, 4
          %s444 = int_to_ptr.hbm [resolvable:$true] %s443
          %446 = dma.vmem_to_hbm [thread:$0]  %s442, 128, %s444, %s428
        $region67: #{tpu_custom_call.1} parent=58 // pred_fallthru
          _
      $region59: #{tpu_custom_call.1} parent=5 // pred_fallthru
        _
      %p447 = scmp.le.s32.totalorder 2, %s14
      // Predicated region
      $region68: #{tpu_custom_call.1} parent=5 // pred_check
        %p448 = pneg %p447
      $region69: #{tpu_custom_call.1} parent=5 // pred_check_branch
        %450 = sbr.rel (%p448) target = $region71
      $region70: #{tpu_custom_call.1} parent=5 // pred_region
        %s451 = ssub.s32 %s14, 2
        // Predicated region
        $region72: #{tpu_custom_call.1} parent=70 // pred_check
          %p452 = pneg %p153
        $region73: #{tpu_custom_call.1} parent=70 // pred_check_branch
          %454 = sbr.rel (%p452) target = $region75
        $region74: #{tpu_custom_call.1} parent=70 // pred_region
          %s455 = sand.u32 %s138, 1
          %s456 = scalar_lea.sflag [#allocation4], %s455
          %s457 = sand.u32 %s138, 1
          %s458 = smul.addr %s457, 8
          %s459 = scalar_lea.vmem [#allocation3], %s458
          %461 = dma.done %s456, 128
        $region75: #{tpu_custom_call.1} parent=70 // pred_fallthru
          _
      $region71: #{tpu_custom_call.1} parent=5 // pred_fallthru
        _
    $region6: #{tpu_custom_call.1} parent=1 // loop_footer
      %s18 = sadd.s32 1, %s14
    $region7: #{tpu_custom_call.1} parent=1 // loop_footer_branch
      %13 = sbr.rel target = $region3
    $region8: #{tpu_custom_call.1} parent=1 // loop_exit
      _
    %462 = vsyncpa [#allocation4], 1
    %s463 = scalar_lea.sflag [#allocation4], 1
    %464 = vsyncpa %s463, 1

</llo_original>
